<compile_context>
chip_gen: v6e
topology: v6e:2x2x1
jax: 0.10.0
libtpu: 0.0.40
codegen_flags: <defaults>
</compile_context>

<pallas_src>
import jax
import jax.numpy as jnp
from jax import lax
from jax.experimental import pallas as pl
from jax.experimental.pallas import tpu as pltpu

BN_EPS = 1e-5
NEG_SLOPE = 0.1
H1, H2 = 100, 20          # true hidden widths of the PyTorch module
PAD = 128                 # lane-padded width used inside the kernel


def _bn_leaky(h, gamma, beta):
    """Training-mode BatchNorm1d (whole-batch stats) + LeakyReLU(0.1).

    Padded lanes (h == 0, gamma == beta == 0) stay exactly 0:
    mean = 0, var = 0, 0 * rsqrt(eps) * 0 + 0 = 0, LeakyReLU(0) = 0.
    """
    mean = jnp.mean(h, axis=0, keepdims=True)                        # [1, PAD]
    var = jnp.mean((h - mean) * (h - mean), axis=0, keepdims=True)   # biased var
    h = (h - mean) * lax.rsqrt(var + BN_EPS) * gamma + beta
    return jnp.where(h >= 0, h, NEG_SLOPE * h)


def _regressor_kernel(x_ref,
                      w1_ref, g1_ref, be1_ref,
                      w2_ref, g2_ref, be2_ref,
                      w3_ref, b3_ref,
                      o_ref):
    x = x_ref[...]                                                    # [B, D_in]

    # Layer 1: Linear(D_in, 128-padded) -> BN -> LeakyReLU.
    # (bias dropped: exactly cancelled by the BN batch-mean subtraction)
    h = jnp.dot(x, w1_ref[...], preferred_element_type=jnp.float32)
    h = _bn_leaky(h, g1_ref[...], be1_ref[...])

    # Layer 2: Linear(128-padded, 128-padded) -> BN -> LeakyReLU.
    h = jnp.dot(h, w2_ref[...], preferred_element_type=jnp.float32)
    h = _bn_leaky(h, g2_ref[...], be2_ref[...])

    # Layer 3: Linear(20, 1) as VPU multiply + lane reduction (MXU wasted at N=1).
    out = jnp.sum(h * w3_ref[...], axis=-1, keepdims=True) + b3_ref[...]
    o_ref[...] = out.astype(o_ref.dtype)


@jax.jit
def nonlinear_regressor(x, packed_params):
    B, d_in = x.shape
    n_in = 1 + len(packed_params)
    vmem_spec = pl.BlockSpec(memory_space=pltpu.MemorySpace.VMEM)

    param_bytes = sum(int(p.size) * p.dtype.itemsize for p in packed_params)
    # x + a few [B, 128] f32 temporaries + output, with generous slack; capped so the
    # request is always legal on v7x (64 MiB physical VMEM per TensorCore).
    act_bytes = B * (d_in + 3 * PAD + 1) * 4
    vmem_limit = int(min(max(3 * (act_bytes + param_bytes), 32 * 2**20), 64 * 2**20))

    cost = pl.CostEstimate(
        flops=2 * B * (d_in * PAD + PAD * PAD + PAD) + 10 * B * PAD,
        transcendentals=2 * PAD,                         # rsqrt per BN feature
        bytes_accessed=B * d_in * 4 + param_bytes + B * 4,
    )

    return pl.pallas_call(
        _regressor_kernel,
        out_shape=jax.ShapeDtypeStruct((B, 1), jnp.float32),
        in_specs=[vmem_spec] * n_in,
        out_specs=vmem_spec,
        compiler_params=pltpu.CompilerParams(vmem_limit_bytes=vmem_limit),
        cost_estimate=cost,
    )(x, *packed_params)


def init_params(key, input_size):
    """PyTorch-shaped params mirroring NonlinearRegressor.__init__ (unpadded)."""
    ks = jax.random.split(key, 6)

    def kaiming_normal(k, fan_in, fan_out):
        # kaiming_normal_(nonlinearity='relu'): std = sqrt(2 / fan_in)
        return jax.random.normal(k, (fan_in, fan_out), jnp.float32) * jnp.sqrt(2.0 / fan_in)

    def linear_bias(k, fan_in, fan_out):
        bound = 1.0 / jnp.sqrt(fan_in)
        return jax.random.uniform(k, (1, fan_out), jnp.float32, -bound, bound)

    # layer1: Linear(input_size, 100) + BatchNorm1d(100)
    w1 = kaiming_normal(ks[0], input_size, H1)
    b1 = linear_bias(ks[1], input_size, H1)
    g1 = jnp.ones((1, H1), jnp.float32)
    be1 = jnp.zeros((1, H1), jnp.float32)

    # layer2: Linear(100, 20) + BatchNorm1d(20)
    w2 = kaiming_normal(ks[2], H1, H2)
    b2 = linear_bias(ks[3], H1, H2)
    g2 = jnp.ones((1, H2), jnp.float32)
    be2 = jnp.zeros((1, H2), jnp.float32)

    # layer3: Linear(20, 1) -- default PyTorch init
    bound3 = 1.0 / jnp.sqrt(float(H2))
    w3 = jax.random.uniform(ks[4], (H2, 1), jnp.float32, -bound3, bound3)
    b3 = jax.random.uniform(ks[5], (1, 1), jnp.float32, -bound3, bound3)

    return (w1, b1, g1, be1, w2, b2, g2, be2, w3, b3)


def pack_params(params):
    """One-time lane padding to 128 + exact simplifications for the kernel."""
    w1, b1, g1, be1, w2, b2, g2, be2, w3, b3 = params
    del b1, b2   # exactly cancelled by training-mode BN mean subtraction

    def pad_last(a, n):
        return jnp.pad(a, [(0, 0)] * (a.ndim - 1) + [(0, n - a.shape[-1])])

    w1p = pad_last(w1, PAD)                                             # [D_in, 128]
    g1p, be1p = pad_last(g1, PAD), pad_last(be1, PAD)                   # pad with 0 (NOT 1)
    w2p = pad_last(jnp.pad(w2, ((0, PAD - w2.shape[0]), (0, 0))), PAD)  # [128, 128]
    g2p, be2p = pad_last(g2, PAD), pad_last(be2, PAD)
    w3p = pad_last(w3.T, PAD)                                           # [1, 128] row
    return (w1p, g1p, be1p, w2p, g2p, be2p, w3p, b3)


def reference_forward(x, params):
    """Pure-JAX reference of the PyTorch module (unpadded, with biases)."""
    w1, b1, g1, be1, w2, b2, g2, be2, w3, b3 = params

    def bn_leaky(h, g, b):
        m = jnp.mean(h, axis=0, keepdims=True)
        v = jnp.mean((h - m) ** 2, axis=0, keepdims=True)
        h = (h - m) / jnp.sqrt(v + BN_EPS) * g + b
        return jnp.where(h >= 0, h, NEG_SLOPE * h)

    h = bn_leaky(x @ w1 + b1, g1, be1)
    h = bn_leaky(h @ w2 + b2, g2, be2)
    return h @ w3 + b3


if __name__ == "__main__":
    key = jax.random.PRNGKey(0)
    k_x, k_p = jax.random.split(key)

    BATCH = 8          # multiple of 8 so the batch axis maps cleanly onto sublanes
    INPUT_SIZE = 32

    x = jax.random.normal(k_x, (BATCH, INPUT_SIZE), jnp.float32)
    params = init_params(k_p, INPUT_SIZE)
    packed = pack_params(params)

    out = nonlinear_regressor(x, packed)
    out = jax.block_until_ready(out)

    ref = reference_forward(x, params)
    assert out.shape == (BATCH, 1), out.shape
    assert jnp.allclose(out, ref, atol=1e-4, rtol=1e-4), (out, ref)

    print("KERNEL_OK")
</pallas_src>

<mosaic_0001>
module attributes {stable_mosaic.version = 11 : i64} {
  func.func @_regressor_kernel(%arg0: memref<8x32xf32, #tpu.memory_space<vmem>>, %arg1: memref<32x128xf32, #tpu.memory_space<vmem>>, %arg2: memref<1x128xf32, #tpu.memory_space<vmem>>, %arg3: memref<1x128xf32, #tpu.memory_space<vmem>>, %arg4: memref<128x128xf32, #tpu.memory_space<vmem>>, %arg5: memref<1x128xf32, #tpu.memory_space<vmem>>, %arg6: memref<1x128xf32, #tpu.memory_space<vmem>>, %arg7: memref<1x128xf32, #tpu.memory_space<vmem>>, %arg8: memref<1x1xf32, #tpu.memory_space<vmem>>, %arg9: memref<8x1xf32, #tpu.memory_space<vmem>>) attributes {dimension_semantics = [], scalar_prefetch = 0 : i64, scratch_operands = 0 : i64, tpu.core_type = #tpu.core_type<tc>} {
    %c0 = arith.constant 0 : index
    %c0_0 = arith.constant 0 : index
    %0 = vector.load %arg0[%c0, %c0_0] : memref<8x32xf32, #tpu.memory_space<vmem>>, vector<8x32xf32>
    %c0_1 = arith.constant 0 : index
    %c0_2 = arith.constant 0 : index
    %1 = vector.load %arg1[%c0_1, %c0_2] : memref<32x128xf32, #tpu.memory_space<vmem>>, vector<32x128xf32>
    %cst = arith.constant dense<0.000000e+00> : vector<8x128xf32>
    %2 = tpu.matmul %0, %1, %cst {dimension_numbers = #tpu.dot_dimension_numbers<[1], [0], [0], [1], [0, 0, 1, 1], [], []>} : vector<8x32xf32>, vector<32x128xf32>, vector<8x128xf32> -> vector<8x128xf32>
    %c0_3 = arith.constant 0 : index
    %c0_4 = arith.constant 0 : index
    %3 = vector.load %arg2[%c0_3, %c0_4] : memref<1x128xf32, #tpu.memory_space<vmem>>, vector<1x128xf32>
    %c0_5 = arith.constant 0 : index
    %c0_6 = arith.constant 0 : index
    %4 = vector.load %arg3[%c0_5, %c0_6] : memref<1x128xf32, #tpu.memory_space<vmem>>, vector<1x128xf32>
    %cst_7 = arith.constant dense<0.000000e+00> : vector<128xf32>
    %5 = vector.multi_reduction <add>, %2, %cst_7 [0] : vector<8x128xf32> to vector<128xf32>
    %6 = vector.shape_cast %5 : vector<128xf32> to vector<1x128xf32>
    %cst_8 = arith.constant 8.000000e+00 : f32
    %7 = vector.broadcast %cst_8 : f32 to vector<1x128xf32>
    %8 = arith.divf %6, %7 : vector<1x128xf32>
    %9 = vector.broadcast %8 : vector<1x128xf32> to vector<8x128xf32>
    %10 = arith.subf %2, %9 : vector<8x128xf32>
    %11 = vector.broadcast %8 : vector<1x128xf32> to vector<8x128xf32>
    %12 = arith.subf %2, %11 : vector<8x128xf32>
    %13 = arith.mulf %10, %12 : vector<8x128xf32>
    %cst_9 = arith.constant dense<0.000000e+00> : vector<128xf32>
    %14 = vector.multi_reduction <add>, %13, %cst_9 [0] : vector<8x128xf32> to vector<128xf32>
    %15 = vector.shape_cast %14 : vector<128xf32> to vector<1x128xf32>
    %cst_10 = arith.constant 8.000000e+00 : f32
    %16 = vector.broadcast %cst_10 : f32 to vector<1x128xf32>
    %17 = arith.divf %15, %16 : vector<1x128xf32>
    %18 = vector.broadcast %8 : vector<1x128xf32> to vector<8x128xf32>
    %19 = arith.subf %2, %18 : vector<8x128xf32>
    %cst_11 = arith.constant 9.99999974E-6 : f32
    %20 = vector.broadcast %cst_11 : f32 to vector<1x128xf32>
    %21 = arith.addf %17, %20 : vector<1x128xf32>
    %22 = math.rsqrt %21 : vector<1x128xf32>
    %23 = vector.broadcast %22 : vector<1x128xf32> to vector<8x128xf32>
    %24 = arith.mulf %19, %23 : vector<8x128xf32>
    %25 = vector.broadcast %3 : vector<1x128xf32> to vector<8x128xf32>
    %26 = arith.mulf %24, %25 : vector<8x128xf32>
    %27 = vector.broadcast %4 : vector<1x128xf32> to vector<8x128xf32>
    %28 = arith.addf %26, %27 : vector<8x128xf32>
    %cst_12 = arith.constant 0.000000e+00 : f32
    %29 = vector.broadcast %cst_12 : f32 to vector<8x128xf32>
    %30 = arith.cmpf oge, %28, %29 : vector<8x128xf32>
    %cst_13 = arith.constant 1.000000e-01 : f32
    %31 = vector.broadcast %cst_13 : f32 to vector<8x128xf32>
    %32 = arith.mulf %31, %28 : vector<8x128xf32>
    %33 = arith.select %30, %28, %32 : vector<8x128xi1>, vector<8x128xf32>
    %c0_14 = arith.constant 0 : index
    %c0_15 = arith.constant 0 : index
    %34 = vector.load %arg4[%c0_14, %c0_15] : memref<128x128xf32, #tpu.memory_space<vmem>>, vector<128x128xf32>
    %cst_16 = arith.constant dense<0.000000e+00> : vector<8x128xf32>
    %35 = tpu.matmul %33, %34, %cst_16 {dimension_numbers = #tpu.dot_dimension_numbers<[1], [0], [0], [1], [0, 0, 1, 1], [], []>} : vector<8x128xf32>, vector<128x128xf32>, vector<8x128xf32> -> vector<8x128xf32>
    %c0_17 = arith.constant 0 : index
    %c0_18 = arith.constant 0 : index
    %36 = vector.load %arg5[%c0_17, %c0_18] : memref<1x128xf32, #tpu.memory_space<vmem>>, vector<1x128xf32>
    %c0_19 = arith.constant 0 : index
    %c0_20 = arith.constant 0 : index
    %37 = vector.load %arg6[%c0_19, %c0_20] : memref<1x128xf32, #tpu.memory_space<vmem>>, vector<1x128xf32>
    %cst_21 = arith.constant dense<0.000000e+00> : vector<128xf32>
    %38 = vector.multi_reduction <add>, %35, %cst_21 [0] : vector<8x128xf32> to vector<128xf32>
    %39 = vector.shape_cast %38 : vector<128xf32> to vector<1x128xf32>
    %cst_22 = arith.constant 8.000000e+00 : f32
    %40 = vector.broadcast %cst_22 : f32 to vector<1x128xf32>
    %41 = arith.divf %39, %40 : vector<1x128xf32>
    %42 = vector.broadcast %41 : vector<1x128xf32> to vector<8x128xf32>
    %43 = arith.subf %35, %42 : vector<8x128xf32>
    %44 = vector.broadcast %41 : vector<1x128xf32> to vector<8x128xf32>
    %45 = arith.subf %35, %44 : vector<8x128xf32>
    %46 = arith.mulf %43, %45 : vector<8x128xf32>
    %cst_23 = arith.constant dense<0.000000e+00> : vector<128xf32>
    %47 = vector.multi_reduction <add>, %46, %cst_23 [0] : vector<8x128xf32> to vector<128xf32>
    %48 = vector.shape_cast %47 : vector<128xf32> to vector<1x128xf32>
    %cst_24 = arith.constant 8.000000e+00 : f32
    %49 = vector.broadcast %cst_24 : f32 to vector<1x128xf32>
    %50 = arith.divf %48, %49 : vector<1x128xf32>
    %51 = vector.broadcast %41 : vector<1x128xf32> to vector<8x128xf32>
    %52 = arith.subf %35, %51 : vector<8x128xf32>
    %cst_25 = arith.constant 9.99999974E-6 : f32
    %53 = vector.broadcast %cst_25 : f32 to vector<1x128xf32>
    %54 = arith.addf %50, %53 : vector<1x128xf32>
    %55 = math.rsqrt %54 : vector<1x128xf32>
    %56 = vector.broadcast %55 : vector<1x128xf32> to vector<8x128xf32>
    %57 = arith.mulf %52, %56 : vector<8x128xf32>
    %58 = vector.broadcast %36 : vector<1x128xf32> to vector<8x128xf32>
    %59 = arith.mulf %57, %58 : vector<8x128xf32>
    %60 = vector.broadcast %37 : vector<1x128xf32> to vector<8x128xf32>
    %61 = arith.addf %59, %60 : vector<8x128xf32>
    %cst_26 = arith.constant 0.000000e+00 : f32
    %62 = vector.broadcast %cst_26 : f32 to vector<8x128xf32>
    %63 = arith.cmpf oge, %61, %62 : vector<8x128xf32>
    %cst_27 = arith.constant 1.000000e-01 : f32
    %64 = vector.broadcast %cst_27 : f32 to vector<8x128xf32>
    %65 = arith.mulf %64, %61 : vector<8x128xf32>
    %66 = arith.select %63, %61, %65 : vector<8x128xi1>, vector<8x128xf32>
    %c0_28 = arith.constant 0 : index
    %c0_29 = arith.constant 0 : index
    %67 = vector.load %arg7[%c0_28, %c0_29] : memref<1x128xf32, #tpu.memory_space<vmem>>, vector<1x128xf32>
    %68 = vector.broadcast %67 : vector<1x128xf32> to vector<8x128xf32>
    %69 = arith.mulf %66, %68 : vector<8x128xf32>
    %cst_30 = arith.constant dense<0.000000e+00> : vector<8xf32>
    %70 = vector.multi_reduction <add>, %69, %cst_30 [1] : vector<8x128xf32> to vector<8xf32>
    %71 = vector.shape_cast %70 : vector<8xf32> to vector<8x1xf32>
    %c0_31 = arith.constant 0 : index
    %c0_32 = arith.constant 0 : index
    %72 = vector.load %arg8[%c0_31, %c0_32] : memref<1x1xf32, #tpu.memory_space<vmem>>, vector<1x1xf32>
    %73 = vector.broadcast %72 : vector<1x1xf32> to vector<8x1xf32>
    %74 = arith.addf %71, %73 : vector<8x1xf32>
    %c0_33 = arith.constant 0 : index
    %c0_34 = arith.constant 0 : index
    %75 = vector.load %arg9[%c0_33, %c0_34] : memref<8x1xf32, #tpu.memory_space<vmem>>, vector<8x1xf32>
    tpu.vector_store %arg9[%c0_33, %c0_34], %74 {strides = array<i32>} : memref<8x1xf32, #tpu.memory_space<vmem>>, vector<8x1xf32>,
    return
  }
}

</mosaic_0001>

<llo_original>
// kernel: nonlinear_regressor.1
$region0: #{nonlinear_regressor.1}
  #allocation0 [shape = 'u32[]', space=smem, size = 0x4, offset = 0x4, fixed_abs, tag = 'smem constant byte address 0x4 - core index']
  #allocation1 [shape = 'u32[144,128]{1,0:T(1,128)}', space=vmem, size = 0x12000, scoped, tag = 'internal scratch']
  #allocation2 [shape = 'f32[1,1]{1,0:T(1,128)S(1)}', space=vmem, size = 0x200, scoped, tag = 'scoped memory for nonlinear_regressor.1']
  %s0 = inlined_call_operand.hbm [shape: f32[8,32], index: 0, kind: input, shape index: {}]
  %s1 = inlined_call_operand.hbm [shape: f32[32,128], index: 1, kind: input, shape index: {}]
  %s2 = inlined_call_operand.vmem [shape: f32[1,128], index: 2, kind: input, shape index: {}]
  %s3 = inlined_call_operand.vmem [shape: f32[1,128], index: 3, kind: input, shape index: {}]
  %s4 = inlined_call_operand.hbm [shape: f32[128,128], index: 4, kind: input, shape index: {}]
  %s5 = inlined_call_operand.vmem [shape: f32[1,128], index: 5, kind: input, shape index: {}]
  %s6 = inlined_call_operand.vmem [shape: f32[1,128], index: 6, kind: input, shape index: {}]
  %s7 = inlined_call_operand.vmem [shape: f32[1,128], index: 7, kind: input, shape index: {}]
  %s8 = inlined_call_operand.<no memory space> [shape: f32[1,1], index: 8, kind: input, shape index: {}]
  %s9 = inlined_call_operand.vmem [shape: f32[8,1], index: 9, kind: output, shape index: {}]
  %s10 = sld [smem:[#allocation0]]
  $region58: #{nonlinear_regressor.1} parent=0
    _
  %s12 = ssub.s32 1, %s10
  %s13 = scalar_select 0, %s12, %s10
  %v14 = vstv %s8
  %15 = vst [vmem:[#allocation2] sm:$0x1] %v14
  $region1: #{nonlinear_regressor.1} parent=0
    #allocation3 [shape = 'u8[4096]{0}', space=vmem, size = 0x1000, scoped, tag = 'input window, operand 0, single buffered']
    #allocation4 [shape = 's32[1]{0}', space=sflag, size = 0x4, scoped, tag = 'scoped memory for nonlinear_regressor.1']
    #allocation5 [shape = 'u8[16384]{0}', space=vmem, size = 0x4000, scoped, tag = 'input window, operand 1, single buffered']
    #allocation6 [shape = 's32[1]{0}', space=sflag, size = 0x4, scoped, tag = 'scoped memory for nonlinear_regressor.1']
    #allocation7 [shape = 'u8[65536]{0}', space=vmem, size = 0x10000, scoped, tag = 'input window, operand 4, single buffered']
    %16 = vsyncpa [#allocation4], 0
    %17 = vsyncpa [#allocation6], 0
    // Predicated region
    $region2: #{nonlinear_regressor.1} parent=1 // pred_check
      _
    $region3: #{nonlinear_regressor.1} parent=1 // pred_check_branch
      %19 = sbr.rel (0) target = $region5
    $region4: #{nonlinear_regressor.1} parent=1 // pred_region
      %s21 = ssub.s32 128, 128
      %22 = vsyncadd [#allocation4], %s21
      %s24 = sshll.u32 [#allocation3], 4
      %s25 = int_to_ptr.vmem [resolvable:$true] %s24
      %27 = dma.hbm_to_vmem [thread:$0]  %s0, 128, %s25, [#allocation4]
    $region5: #{nonlinear_regressor.1} parent=1 // pred_fallthru
      _
    // Predicated region
    $region6: #{nonlinear_regressor.1} parent=1 // pred_check
      _
    $region7: #{nonlinear_regressor.1} parent=1 // pred_check_branch
      %29 = sbr.rel (0) target = $region9
    $region8: #{nonlinear_regressor.1} parent=1 // pred_region
      %s31 = ssub.s32 512, 512
      %32 = vsyncadd [#allocation6], %s31
      %s33 = sshll.u32 [#allocation5], 4
      %s34 = int_to_ptr.vmem [resolvable:$true] %s33
      %39 = dma.hbm_to_vmem [thread:$0]  %s1, 512, %s34, [#allocation6], 128, 128, 8
    $region9: #{nonlinear_regressor.1} parent=1 // pred_fallthru
      _
    // Predicated region
    $region10: #{nonlinear_regressor.1} parent=1 // pred_check
      _
    $region11: #{nonlinear_regressor.1} parent=1 // pred_check_branch
      %41 = sbr.rel (0) target = $region13
    $region12: #{nonlinear_regressor.1} parent=1 // pred_region
      _
    $region13: #{nonlinear_regressor.1} parent=1 // pred_fallthru
      _
    // Predicated region
    $region14: #{nonlinear_regressor.1} parent=1 // pred_check
      _
    $region15: #{nonlinear_regressor.1} parent=1 // pred_check_branch
      %43 = sbr.rel (0) target = $region17
    $region16: #{nonlinear_regressor.1} parent=1 // pred_region
      _
    $region17: #{nonlinear_regressor.1} parent=1 // pred_fallthru
      _
    // Predicated region
    $region18: #{nonlinear_regressor.1} parent=1 // pred_check
      _
    $region19: #{nonlinear_regressor.1} parent=1 // pred_check_branch
      %45 = sbr.rel (0) target = $region21
    $region20: #{nonlinear_regressor.1} parent=1 // pred_region
      %s47 = ssub.s32 2048, 2048
      %48 = vsyncadd [#allocation6], %s47
      %s49 = sshll.u32 [#allocation7], 4
      %s50 = int_to_ptr.vmem [resolvable:$true] %s49
      %55 = dma.hbm_to_vmem [thread:$0]  %s4, 2048, %s50, [#allocation6], 128, 128, 8
    $region21: #{nonlinear_regressor.1} parent=1 // pred_fallthru
      _
    // Predicated region
    $region22: #{nonlinear_regressor.1} parent=1 // pred_check
      _
    $region23: #{nonlinear_regressor.1} parent=1 // pred_check_branch
      %57 = sbr.rel (0) target = $region25
    $region24: #{nonlinear_regressor.1} parent=1 // pred_region
      _
    $region25: #{nonlinear_regressor.1} parent=1 // pred_fallthru
      _
    // Predicated region
    $region26: #{nonlinear_regressor.1} parent=1 // pred_check
      _
    $region27: #{nonlinear_regressor.1} parent=1 // pred_check_branch
      %59 = sbr.rel (0) target = $region29
    $region28: #{nonlinear_regressor.1} parent=1 // pred_region
      _
    $region29: #{nonlinear_regressor.1} parent=1 // pred_fallthru
      _
    // Predicated region
    $region30: #{nonlinear_regressor.1} parent=1 // pred_check
      _
    $region31: #{nonlinear_regressor.1} parent=1 // pred_check_branch
      %61 = sbr.rel (0) target = $region33
    $region32: #{nonlinear_regressor.1} parent=1 // pred_region
      _
    $region33: #{nonlinear_regressor.1} parent=1 // pred_fallthru
      _
    // Predicated region
    $region34: #{nonlinear_regressor.1} parent=1 // pred_check
      _
    $region35: #{nonlinear_regressor.1} parent=1 // pred_check_branch
      %63 = sbr.rel (0) target = $region37
    $region36: #{nonlinear_regressor.1} parent=1 // pred_region
      _
    $region37: #{nonlinear_regressor.1} parent=1 // pred_fallthru
      _
    // Predicated region
    $region38: #{nonlinear_regressor.1} parent=1 // pred_check
      _
    $region39: #{nonlinear_regressor.1} parent=1 // pred_check_branch
      %65 = sbr.rel (0) target = $region41
    $region40: #{nonlinear_regressor.1} parent=1 // pred_region
      %66 = dma.done [#allocation4], 128
    $region41: #{nonlinear_regressor.1} parent=1 // pred_fallthru
      _
    // Predicated region
    $region42: #{nonlinear_regressor.1} parent=1 // pred_check
      _
    $region43: #{nonlinear_regressor.1} parent=1 // pred_check_branch
      %68 = sbr.rel (0) target = $region45
    $region44: #{nonlinear_regressor.1} parent=1 // pred_region
      %69 = dma.done [#allocation6], 512
    $region45: #{nonlinear_regressor.1} parent=1 // pred_fallthru
      _
    // Predicated region
    $region46: #{nonlinear_regressor.1} parent=1 // pred_check
      _
    $region47: #{nonlinear_regressor.1} parent=1 // pred_check_branch
      %71 = sbr.rel (0) target = $region49
    $region48: #{nonlinear_regressor.1} parent=1 // pred_region
      %72 = dma.done [#allocation6], 2048
    $region49: #{nonlinear_regressor.1} parent=1 // pred_fallthru
      _
    %v73 = vld [vmem:[#allocation3] sm:$0xff]
    %v74 = vld [vmem:[#allocation5] sm:$0xff]
    %v75 = vld [vmem:[#allocation5 + $0x8] sm:$0xff]
    %v76 = vld [vmem:[#allocation5 + $0x10] sm:$0xff]
    %v77 = vld [vmem:[#allocation5 + $0x18] sm:$0xff]
    %vm78 = vcmask 261120
    %v80 = vsel %vm78, %v73, 0
    %82 = vmatprep.subr.mxu0 0.0
    %83 = vmatpush1.msra.mxu0 0.0
    %84 = vmatprep.subr.mxu0 0.0
    %85 = vmatpush1.msra.mxu0 0.0
    %86 = vmatprep.subr.mxu0 0.0
    %87 = vmatpush1.msra.mxu0 0.0
    %88 = vmatprep.subr.mxu0 0.0
    %89 = vmatpush1.msra.mxu0 0.0
    %90 = vmatprep.subr.mxu0 0.0
    %91 = vmatpush1.msra.mxu0 0.0
    %92 = vmatprep.subr.mxu0 0.0
    %93 = vmatpush1.msra.mxu0 0.0
    %94 = vmatprep.subr.mxu0 0.0
    %95 = vmatpush1.msra.mxu0 0.0
    %96 = vmatprep.subr.mxu0 0.0
    %97 = vmatpush1.msra.mxu0 0.0
    %98 = vmatprep.subr.mxu0 0.0
    %99 = vmatpush1.msra.mxu0 0.0
    %100 = vmatprep.subr.mxu0 0.0
    %101 = vmatpush1.msra.mxu0 0.0
    %102 = vmatprep.subr.mxu0 0.0
    %103 = vmatpush1.msra.mxu0 0.0
    %104 = vmatprep.subr.mxu0 0.0
    %105 = vmatpush1.msra.mxu0 0.0
    %106 = vmatprep.subr.mxu0 0.0
    %107 = vmatpush1.msra.mxu0 %v77
    %108 = vmatprep.subr.mxu0 0.0
    %109 = vmatpush1.msra.mxu0 %v76
    %110 = vmatprep.subr.mxu0 0.0
    %111 = vmatpush1.msra.mxu0 %v75
    %112 = vmatprep.subr.mxu0 0.0
    %113 = vmatpush1.msra.mxu0 %v74
    %114 = vmatprep.subr.mxu0 0.0
    %115 = vmatpush2.msra.mxu0 0.0
    %116 = vmatprep.subr.mxu0 0.0
    %117 = vmatpush2.msra.mxu0 0.0
    %118 = vmatprep.subr.mxu0 0.0
    %119 = vmatpush2.msra.mxu0 0.0
    %120 = vmatprep.subr.mxu0 0.0
    %121 = vmatpush2.msra.mxu0 0.0
    %122 = vmatprep.subr.mxu0 0.0
    %123 = vmatpush2.msra.mxu0 0.0
    %124 = vmatprep.subr.mxu0 0.0
    %125 = vmatpush2.msra.mxu0 0.0
    %126 = vmatprep.subr.mxu0 0.0
    %127 = vmatpush2.msra.mxu0 0.0
    %128 = vmatprep.subr.mxu0 0.0
    %129 = vmatpush2.msra.mxu0 0.0
    %130 = vmatprep.subr.mxu0 0.0
    %131 = vmatpush2.msra.mxu0 0.0
    %132 = vmatprep.subr.mxu0 0.0
    %133 = vmatpush2.msra.mxu0 0.0
    %134 = vmatprep.subr.mxu0 0.0
    %135 = vmatpush2.msra.mxu0 0.0
    %136 = vmatprep.subr.mxu0 0.0
    %137 = vmatpush2.msra.mxu0 0.0
    %138 = vmatprep.subr.mxu0 0.0
    %139 = vmatpush2.msra.mxu0 0.0
    %140 = vmatprep.subr.mxu0 0.0
    %141 = vmatpush2.msra.mxu0 0.0
    %142 = vmatprep.subr.mxu0 0.0
    %143 = vmatpush2.msra.mxu0 0.0
    %144 = vmatprep.subr.mxu0 0.0
    %145 = vmatpush2.msra.mxu0 0.0
    %146 = vmatprep.mubr.f32.mxu0 0.0
    %147 = vmatmul.mubr.f32.gmra.mxu0 %v80
    %v148 = vpop.f32.mrf.mxu0
    %v149 = vadd.f32 0.0, %v148
    %v150 = vpop.f32.mrf.mxu0
    %151 = vdwg.mxu0
    %v152 = vld [vmem:[%s2] sm:$0x1]
    %v153 = vld [vmem:[%s3] sm:$0x1]
    %v154 = vrot.slane %v149, 4
    %v155 = vadd.f32 %v149, %v154
    %v156 = vrot.slane %v155, 2
    %v157 = vadd.f32 %v155, %v156
    %v158 = vrot.slane %v157, 1
    %v159 = vadd.f32 %v157, %v158
    %v160 = vrcp.pop 8.0
    %v161 = vmul.f32 %v159, %v160
    %v162 = vsub.f32 %v149, %v161
    %v163 = vmul.f32 %v162, %v162
    %v164 = vrot.slane %v163, 4
    %v165 = vadd.f32 %v163, %v164
    %v166 = vrot.slane %v165, 2
    %v167 = vadd.f32 %v165, %v166
    %v168 = vrot.slane %v167, 1
    %v169 = vadd.f32 %v167, %v168
    %v170 = vmul.f32 %v169, %v160
    %v171 = vadd.f32 %v170, 1e-05
    %v172 = vrsqrt.pop %v171
    %v173 = vmul.f32 %v162, %v172
    %v175 = vlaneseq
    %v176 = vshrl.u32 %v175, 7
    %v177 = vsub.s32 0, %v176
    %v178 = vrot.slane %v152, %v177
    %v180 = vmul.f32 %v173, %v178
    %v182 = vlaneseq
    %v183 = vshrl.u32 %v182, 7
    %v184 = vsub.s32 0, %v183
    %v185 = vrot.slane %v153, %v184
    %v187 = vadd.f32 %v180, %v185
    %vm188 = vcmp.ge.f32.partialorder %v187, 0.0
    %v189 = vmul.f32 %v187, 0.1
    %v190 = vsel %vm188, %v187, %v189
    %v191 = vld [vmem:[#allocation7] sm:$0xff]
    %v192 = vld [vmem:[#allocation7 + $0x8] sm:$0xff]
    %v193 = vld [vmem:[#allocation7 + $0x10] sm:$0xff]
    %v194 = vld [vmem:[#allocation7 + $0x18] sm:$0xff]
    %v195 = vld [vmem:[#allocation7 + $0x20] sm:$0xff]
    %v196 = vld [vmem:[#allocation7 + $0x28] sm:$0xff]
    %v197 = vld [vmem:[#allocation7 + $0x30] sm:$0xff]
    %v198 = vld [vmem:[#allocation7 + $0x38] sm:$0xff]
    %v199 = vld [vmem:[#allocation7 + $0x40] sm:$0xff]
    %v200 = vld [vmem:[#allocation7 + $0x48] sm:$0xff]
    %v201 = vld [vmem:[#allocation7 + $0x50] sm:$0xff]
    %v202 = vld [vmem:[#allocation7 + $0x58] sm:$0xff]
    %v203 = vld [vmem:[#allocation7 + $0x60] sm:$0xff]
    %v204 = vld [vmem:[#allocation7 + $0x68] sm:$0xff]
    %v205 = vld [vmem:[#allocation7 + $0x70] sm:$0xff]
    %v206 = vld [vmem:[#allocation7 + $0x78] sm:$0xff]
    %207 = vmatprep.subr.mxu0 0.0
    %208 = vmatpush1.msra.mxu0 %v206
    %209 = vmatprep.subr.mxu0 0.0
    %210 = vmatpush1.msra.mxu0 %v205
    %211 = vmatprep.subr.mxu0 0.0
    %212 = vmatpush1.msra.mxu0 %v204
    %213 = vmatprep.subr.mxu0 0.0
    %214 = vmatpush1.msra.mxu0 %v203
    %215 = vmatprep.subr.mxu0 0.0
    %216 = vmatpush1.msra.mxu0 %v202
    %217 = vmatprep.subr.mxu0 0.0
    %218 = vmatpush1.msra.mxu0 %v201
    %219 = vmatprep.subr.mxu0 0.0
    %220 = vmatpush1.msra.mxu0 %v200
    %221 = vmatprep.subr.mxu0 0.0
    %222 = vmatpush1.msra.mxu0 %v199
    %223 = vmatprep.subr.mxu0 0.0
    %224 = vmatpush1.msra.mxu0 %v198
    %225 = vmatprep.subr.mxu0 0.0
    %226 = vmatpush1.msra.mxu0 %v197
    %227 = vmatprep.subr.mxu0 0.0
    %228 = vmatpush1.msra.mxu0 %v196
    %229 = vmatprep.subr.mxu0 0.0
    %230 = vmatpush1.msra.mxu0 %v195
    %231 = vmatprep.subr.mxu0 0.0
    %232 = vmatpush1.msra.mxu0 %v194
    %233 = vmatprep.subr.mxu0 0.0
    %234 = vmatpush1.msra.mxu0 %v193
    %235 = vmatprep.subr.mxu0 0.0
    %236 = vmatpush1.msra.mxu0 %v192
    %237 = vmatprep.subr.mxu0 0.0
    %238 = vmatpush1.msra.mxu0 %v191
    %239 = vmatprep.subr.mxu0 0.0
    %240 = vmatpush2.msra.mxu0 0.0
    %241 = vmatprep.subr.mxu0 0.0
    %242 = vmatpush2.msra.mxu0 0.0
    %243 = vmatprep.subr.mxu0 0.0
    %244 = vmatpush2.msra.mxu0 0.0
    %245 = vmatprep.subr.mxu0 0.0
    %246 = vmatpush2.msra.mxu0 0.0
    %247 = vmatprep.subr.mxu0 0.0
    %248 = vmatpush2.msra.mxu0 0.0
    %249 = vmatprep.subr.mxu0 0.0
    %250 = vmatpush2.msra.mxu0 0.0
    %251 = vmatprep.subr.mxu0 0.0
    %252 = vmatpush2.msra.mxu0 0.0
    %253 = vmatprep.subr.mxu0 0.0
    %254 = vmatpush2.msra.mxu0 0.0
    %255 = vmatprep.subr.mxu0 0.0
    %256 = vmatpush2.msra.mxu0 0.0
    %257 = vmatprep.subr.mxu0 0.0
    %258 = vmatpush2.msra.mxu0 0.0
    %259 = vmatprep.subr.mxu0 0.0
    %260 = vmatpush2.msra.mxu0 0.0
    %261 = vmatprep.subr.mxu0 0.0
    %262 = vmatpush2.msra.mxu0 0.0
    %263 = vmatprep.subr.mxu0 0.0
    %264 = vmatpush2.msra.mxu0 0.0
    %265 = vmatprep.subr.mxu0 0.0
    %266 = vmatpush2.msra.mxu0 0.0
    %267 = vmatprep.subr.mxu0 0.0
    %268 = vmatpush2.msra.mxu0 0.0
    %269 = vmatprep.subr.mxu0 0.0
    %270 = vmatpush2.msra.mxu0 0.0
    %271 = vmatprep.mubr.f32.mxu0 0.0
    %272 = vmatmul.mubr.f32.gmra.mxu0 %v190
    %v273 = vpop.f32.mrf.mxu0
    %v274 = vadd.f32 0.0, %v273
    %v275 = vpop.f32.mrf.mxu0
    %276 = vdwg.mxu0
    %v277 = vld [vmem:[%s5] sm:$0x1]
    %v278 = vld [vmem:[%s6] sm:$0x1]
    %v279 = vrot.slane %v274, 4
    %v280 = vadd.f32 %v274, %v279
    %v281 = vrot.slane %v280, 2
    %v282 = vadd.f32 %v280, %v281
    %v283 = vrot.slane %v282, 1
    %v284 = vadd.f32 %v282, %v283
    %v285 = vmul.f32 %v284, %v160
    %v286 = vsub.f32 %v274, %v285
    %v287 = vmul.f32 %v286, %v286
    %v288 = vrot.slane %v287, 4
    %v289 = vadd.f32 %v287, %v288
    %v290 = vrot.slane %v289, 2
    %v291 = vadd.f32 %v289, %v290
    %v292 = vrot.slane %v291, 1
    %v293 = vadd.f32 %v291, %v292
    %v294 = vmul.f32 %v293, %v160
    %v295 = vadd.f32 %v294, 1e-05
    %v296 = vrsqrt.pop %v295
    %v297 = vmul.f32 %v286, %v296
    %v299 = vlaneseq
    %v300 = vshrl.u32 %v299, 7
    %v301 = vsub.s32 0, %v300
    %v302 = vrot.slane %v277, %v301
    %v304 = vmul.f32 %v297, %v302
    %v306 = vlaneseq
    %v307 = vshrl.u32 %v306, 7
    %v308 = vsub.s32 0, %v307
    %v309 = vrot.slane %v278, %v308
    %v311 = vadd.f32 %v304, %v309
    %vm312 = vcmp.ge.f32.partialorder %v311, 0.0
    %v313 = vmul.f32 %v311, 0.1
    %v314 = vsel %vm312, %v311, %v313
    %v315 = vld [vmem:[%s7] sm:$0x1]
    %v317 = vlaneseq
    %v318 = vshrl.u32 %v317, 7
    %v319 = vsub.s32 0, %v318
    %v320 = vrot.slane %v315, %v319
    %v322 = vmul.f32 %v314, %v320
    %323 = vadd.xlane.f32.xlu0 %v322
    %v324 = vpop.xlane.xlu0 %323
    %v325 = vld [vmem:[#allocation2] sm:$0x1]
    %v327 = vlaneseq
    %v328 = vshrl.u32 %v327, 7
    %v329 = vsub.s32 0, %v328
    %v330 = vrot.slane %v325, %v329
    %v332 = vadd.f32 %v324, %v330
    %vm333 = vcmask 7168
    %334 = vst.msk [vmem:[%s9] sm:$0xff] %vm333, %v332
    // Predicated region
    $region50: #{nonlinear_regressor.1} parent=1 // pred_check
      _
    $region51: #{nonlinear_regressor.1} parent=1 // pred_check_branch
      %336 = sbr.rel (0) target = $region53
    $region52: #{nonlinear_regressor.1} parent=1 // pred_region
      _
    $region53: #{nonlinear_regressor.1} parent=1 // pred_fallthru
      _
    // Predicated region
    $region54: #{nonlinear_regressor.1} parent=1 // pred_check
      _
    $region55: #{nonlinear_regressor.1} parent=1 // pred_check_branch
      %338 = sbr.rel (0) target = $region57
    $region56: #{nonlinear_regressor.1} parent=1 // pred_region
      _
    $region57: #{nonlinear_regressor.1} parent=1 // pred_fallthru
      _
    %339 = vsyncpa [#allocation4], 1
    %340 = vsyncpa [#allocation6], 1

</llo_original>
